<compile_context>
chip_gen: v6e
topology: v6e:2x2x1
jax: 0.10.0
libtpu: 0.0.40
codegen_flags: <defaults>
</compile_context>

<pallas_src>
import inspect

import jax
import jax.numpy as jnp
from jax import lax
from jax.experimental import pallas as pl
from jax.experimental.pallas import tpu as pltpu


# ---------------------------------------------------------------------------
# Kernel
# ---------------------------------------------------------------------------
def _gru_cell_kernel(x_ref, h_ref, wcat_ref, bcat_ref, out_ref):
    """One GRU step on a row-major tile of tm rows.

    x_ref:    (tm, Din)    HBM/native dtype (f32 or bf16)
    h_ref:    (tm, H)      HBM/native dtype
    wcat_ref: (4H, Din+H)  compute dtype; fused rows = [r,z | n_x | n_h]
    bcat_ref: (1, 4H)      f32; [b_ih_rz + b_hh_rz | b_ih_n | b_hh_n]
    out_ref:  (tm, H)      out dtype
    """
    H = h_ref.shape[1]
    cdt = wcat_ref.dtype

    x = x_ref[...]
    h = h_ref[...]

    # Stack [x | h] along lanes (VMEM only, no HBM pass) and do ONE fused
    # matmul for all gate pre-activations, contracting the last dims of both
    # operands so no transposed copies of x / h are ever materialised.
    xh = jnp.concatenate(
        [x.astype(jnp.float32), h.astype(jnp.float32)], axis=1).astype(cdt)
    g = lax.dot_general(
        xh, wcat_ref[...],
        dimension_numbers=(((1,), (1,)), ((), ())),
        preferred_element_type=jnp.float32)                 # (tm, 4H), f32 acc
    g = g + bcat_ref[...]                                   # one broadcast bias add

    # Lane gate order: [r | z | n_x | n_h]; the r/z columns already contain the
    # summed input+hidden contributions because their weight rows were fused.
    # NOTE: for very large H, restructure to consume g per-gate (or stage it in
    # a VMEM scratch) so both halves aren't live at once; irrelevant at H=32.
    rz = jax.nn.sigmoid(g[:, :2 * H])
    r = rz[:, :H]
    z = rz[:, H:]
    n = jnp.tanh(g[:, 2 * H:3 * H] + r * g[:, 3 * H:])

    # Blend with the un-quantised hidden state (h was never rounded to bf16).
    h_f32 = h.astype(jnp.float32)
    out_ref[...] = (n + z * (h_f32 - n)).astype(out_ref.dtype)


# ---------------------------------------------------------------------------
# Tile selection (VMEM-budget aware)
# ---------------------------------------------------------------------------
_VMEM_BUDGET = 12 * 1024 * 1024   # stays under every chip's default scoped
                                  # VMEM (16 MiB v5e, 32 MiB v6e/v7x); v7x only
                                  # has 64 MiB physical, so don't be greedy.


def _tile_vmem_bytes(tm, din, h, x_b, h_b, o_b, c_b):
    """Rough per-call VMEM footprint (bytes) for a row tile of tm rows."""
    k = din + h
    io = 2 * tm * (din * x_b + h * h_b + h * o_b)          # double-buffered x/h/out tiles
    weights = 2 * (4 * h * k * c_b + 4 * h * 4)            # fused W/b (worst case 2 bufs)
    interm = tm * (k * (4 + c_b) + 2 * (4 * h) * 4 + 3 * h * 4)  # xh, g, gate temps (f32)
    return io + weights + interm


def _choose_tm(n_rows, din, h, x_b, h_b, o_b, c_b):
    def fits(tm):
        return _tile_vmem_bytes(tm, din, h, x_b, h_b, o_b, c_b) <= _VMEM_BUDGET

    tm = None
    # Biggest tile first: per grid step costs ~0.35 us and 512-row tiles reach
    # only ~85% of the HBM roofline, so larger tiles are strictly better as
    # long as they fit the VMEM budget.
    for cand in (4096, 2048, 1024, 512, 256, 128):
        if cand <= n_rows and n_rows % cand == 0 and fits(cand):
            tm = cand
            break
    if tm is None:
        tm = n_rows                                        # single full-array tile (small / odd N)
    # Megacore (v7x, 2 TensorCores): if this left a 1-step grid, split in two
    # as long as the halves stay >= 512 rows, so the extra step is ~free on
    # single-TC v5e/v6e while keeping both v7x cores busy.
    if tm == n_rows and n_rows % 2 == 0 and (n_rows // 2) % 8 == 0 \
            and n_rows // 2 >= 512 and fits(n_rows // 2):
        tm = n_rows // 2
    return tm


def _supports_pipeline_mode():
    try:
        return hasattr(pl, "Buffered") and (
            "pipeline_mode" in inspect.signature(pl.BlockSpec).parameters
        )
    except (TypeError, ValueError):
        return False


_HAS_PIPELINE_MODE = _supports_pipeline_mode()


def _resident_spec(shape):
    """BlockSpec for grid-invariant (fused weight / bias) operands.

    Their block index never changes across the grid, so double-buffering them
    is pure VMEM waste; single-buffer when the installed Pallas supports it.
    """
    index_map = lambda i: (0,) * len(shape)
    if _HAS_PIPELINE_MODE:
        return pl.BlockSpec(shape, index_map, pipeline_mode=pl.Buffered(1))
    return pl.BlockSpec(shape, index_map)


# ---------------------------------------------------------------------------
# Wrapper
# ---------------------------------------------------------------------------
def gru_forward(x, y, w_ih, w_hh, b_ih, b_hh, *, tm=None,
                compute_dtype=jnp.bfloat16, out_dtype=None):
    """Single GRU step. x: (N, Din), y: (N, H) -> (N, H).

    Weights use the PyTorch nn.GRU layout: w_ih (3H, Din), w_hh (3H, H),
    b_ih / b_hh (3H,), gate order (r, z, n).  x / y are read in their stored
    dtype (pass bf16 arrays to halve input HBM bytes) and cast to
    `compute_dtype` (default bf16 — MXU-native on every generation incl. v5e)
    only inside the kernel; accumulation, nonlinearities and the blend are
    always f32.  `out_dtype` (default y.dtype) may be bf16 to halve output
    HBM bytes.
    """
    N, Din = x.shape
    N2, H = y.shape
    assert N2 == N
    assert w_ih.shape == (3 * H, Din) and w_hh.shape == (3 * H, H)
    assert b_ih.shape == (3 * H,) and b_hh.shape == (3 * H,)

    if out_dtype is None:
        out_dtype = y.dtype
    x_b = jnp.dtype(x.dtype).itemsize
    h_b = jnp.dtype(y.dtype).itemsize
    o_b = jnp.dtype(out_dtype).itemsize
    c_b = jnp.dtype(compute_dtype).itemsize

    if tm is None:
        tm = _choose_tm(N, Din, H, x_b, h_b, o_b, c_b)
    assert tm == N or (N % tm == 0 and tm % 8 == 0), (
        "tm must divide N and be a multiple of 8 (or equal N); no tail-tile support")

    # Fused weight / bias prep (tiny, grid-invariant, resident in VMEM):
    #   rows [0 : 2H) = [W_ih_rz | W_hh_rz]   -> r/z pre-activations in one shot
    #   rows [2H: 3H) = [W_ih_n  |    0    ]  -> x-part of n
    #   rows [3H: 4H) = [   0    | W_hh_n  ]  -> h-part of n (multiplied by r)
    zeros_x = jnp.zeros((H, Din), w_ih.dtype)
    zeros_h = jnp.zeros((H, H), w_hh.dtype)
    w_cat = jnp.concatenate([
        jnp.concatenate([w_ih[:2 * H], w_hh[:2 * H]], axis=1),
        jnp.concatenate([w_ih[2 * H:], zeros_h], axis=1),
        jnp.concatenate([zeros_x, w_hh[2 * H:]], axis=1),
    ], axis=0).astype(compute_dtype)                       # (4H, Din + H)
    b_cat = jnp.concatenate([
        b_ih[:2 * H] + b_hh[:2 * H],                        # pre-summed r/z bias
        b_ih[2 * H:],                                       # n, input part
        b_hh[2 * H:],                                       # n, hidden part
    ]).reshape(1, 4 * H).astype(jnp.float32)               # (1, 4H)

    grid = (pl.cdiv(N, tm),)
    return pl.pallas_call(
        _gru_cell_kernel,
        out_shape=jax.ShapeDtypeStruct((N, H), out_dtype),
        grid_spec=pltpu.PrefetchScalarGridSpec(
            num_scalar_prefetch=0,
            grid=grid,
            in_specs=[
                pl.BlockSpec((tm, Din), lambda i: (i, 0)),   # x row tile (row-major, no transpose)
                pl.BlockSpec((tm, H), lambda i: (i, 0)),     # h row tile
                _resident_spec((4 * H, Din + H)),            # fused W_cat
                _resident_spec((1, 4 * H)),                  # fused bias
            ],
            out_specs=pl.BlockSpec((tm, H), lambda i: (i, 0)),  # row-major output
        ),
        compiler_params=pltpu.CompilerParams(
            dimension_semantics=("parallel",),
            # Tile choice is already budgeted to fit every chip's default
            # scoped VMEM limit, so vmem_limit_bytes is left at its default.
        ),
    )(x, y, w_cat, b_cat)


# ---------------------------------------------------------------------------
# Pure-JAX reference (PyTorch nn.GRU single-step math, PyTorch weight layout)
# ---------------------------------------------------------------------------
def gru_reference(x, y, w_ih, w_hh, b_ih, b_hh):
    H = y.shape[-1]
    gi = x @ w_ih.T + b_ih                # (N, 3H)
    gh = y @ w_hh.T + b_hh                # (N, 3H)
    r = jax.nn.sigmoid(gi[:, :H] + gh[:, :H])
    z = jax.nn.sigmoid(gi[:, H:2 * H] + gh[:, H:2 * H])
    n = jnp.tanh(gi[:, 2 * H:] + r * gh[:, 2 * H:])
    return (1.0 - z) * n + z * y


if __name__ == "__main__":
    # Small shapes consistent with the module's forward: N node rows,
    # Din == input_size, H == hidden_size (nn.GRU requires equality at runtime).
    N, INPUT_SIZE, HIDDEN_SIZE = 256, 32, 32

    key = jax.random.PRNGKey(0)
    k_x, k_y, k_wih, k_whh, k_bih, k_bhh = jax.random.split(key, 6)

    # Deterministic parameter init (PyTorch default: U(-1/sqrt(H), 1/sqrt(H))),
    # stored in the native PyTorch nn.GRU layout.
    bound = 1.0 / (HIDDEN_SIZE ** 0.5)
    w_ih = jax.random.uniform(k_wih, (3 * HIDDEN_SIZE, INPUT_SIZE),
                              minval=-bound, maxval=bound, dtype=jnp.float32)
    w_hh = jax.random.uniform(k_whh, (3 * HIDDEN_SIZE, HIDDEN_SIZE),
                              minval=-bound, maxval=bound, dtype=jnp.float32)
    b_ih = jax.random.uniform(k_bih, (3 * HIDDEN_SIZE,),
                              minval=-bound, maxval=bound, dtype=jnp.float32)
    b_hh = jax.random.uniform(k_bhh, (3 * HIDDEN_SIZE,),
                              minval=-bound, maxval=bound, dtype=jnp.float32)

    x = jax.random.normal(k_x, (N, INPUT_SIZE), dtype=jnp.float32)
    y = jax.random.normal(k_y, (N, HIDDEN_SIZE), dtype=jnp.float32)

    ref = gru_reference(x, y, w_ih, w_hh, b_ih, b_hh)

    # 1) all-f32 compute path: near-exact check against the reference (small
    #    tolerance slack only for the fused-K accumulation order).
    out_f32 = gru_forward(x, y, w_ih, w_hh, b_ih, b_hh,
                          compute_dtype=jnp.float32)
    out_f32 = jax.block_until_ready(out_f32)
    assert out_f32.shape == (N, HIDDEN_SIZE) and out_f32.dtype == jnp.float32
    assert jnp.allclose(out_f32, ref, atol=1e-4, rtol=1e-4), "f32 mismatch vs reference"

    # 2) default bf16 MXU path with bf16 output (f32 accumulation + f32
    #    nonlinearities + un-quantised h blend): small quantization error only.
    out_bf16 = gru_forward(x, y, w_ih, w_hh, b_ih, b_hh,
                           compute_dtype=jnp.bfloat16, out_dtype=jnp.bfloat16)
    out_bf16 = jax.block_until_ready(out_bf16)
    assert out_bf16.shape == (N, HIDDEN_SIZE) and out_bf16.dtype == jnp.bfloat16
    assert float(jnp.max(jnp.abs(out_bf16.astype(jnp.float32) - ref))) < 1e-1, \
        "bf16-compute path drifted vs reference"

    # 3) production bandwidth config: bf16 activations in HBM as well
    #    (halves input bytes on the most bandwidth-starved generations).
    out_all_bf16 = gru_forward(x.astype(jnp.bfloat16), y.astype(jnp.bfloat16),
                               w_ih, w_hh, b_ih, b_hh,
                               compute_dtype=jnp.bfloat16, out_dtype=jnp.bfloat16)
    out_all_bf16 = jax.block_until_ready(out_all_bf16)
    assert out_all_bf16.shape == (N, HIDDEN_SIZE)
    assert float(jnp.max(jnp.abs(out_all_bf16.astype(jnp.float32) - ref))) < 1e-1, \
        "all-bf16 path drifted vs reference"

    print("KERNEL_OK")
</pallas_src>

<mosaic_0001>
module attributes {stable_mosaic.version = 11 : i64} {
  func.func @_gru_cell_kernel(%arg0: i32, %arg1: memref<256x32xf32, #tpu.memory_space<vmem>>, %arg2: memref<256x32xf32, #tpu.memory_space<vmem>>, %arg3: memref<128x64xf32, #tpu.memory_space<vmem>>, %arg4: memref<1x128xf32, #tpu.memory_space<vmem>>, %arg5: memref<256x32xf32, #tpu.memory_space<vmem>>) attributes {dimension_semantics = [#tpu.dimension_semantics<parallel>], iteration_bounds = array<i64: 1>, scalar_prefetch = 0 : i64, scratch_operands = 0 : i64, tpu.core_type = #tpu.core_type<tc>, window_params = [{transform_indices = @transform_0, window_bounds = array<i64: 256, 32>}, {transform_indices = @transform_1, window_bounds = array<i64: 256, 32>}, {pipeline_mode = #tpu.pipeline_mode<synchronous>, transform_indices = @transform_2, window_bounds = array<i64: 128, 64>}, {pipeline_mode = #tpu.pipeline_mode<synchronous>, transform_indices = @transform_3, window_bounds = array<i64: 1, 128>}, {transform_indices = @transform_4, window_bounds = array<i64: 256, 32>}]} {
    %c0 = arith.constant 0 : index
    %c0_0 = arith.constant 0 : index
    %0 = vector.load %arg1[%c0, %c0_0] : memref<256x32xf32, #tpu.memory_space<vmem>>, vector<256x32xf32>
    %c0_1 = arith.constant 0 : index
    %c0_2 = arith.constant 0 : index
    %1 = vector.load %arg2[%c0_1, %c0_2] : memref<256x32xf32, #tpu.memory_space<vmem>>, vector<256x32xf32>
    %2 = tpu.concatenate %0, %1 in 1 : vector<256x32xf32>, vector<256x32xf32> -> vector<256x64xf32>
    %c0_3 = arith.constant 0 : index
    %c0_4 = arith.constant 0 : index
    %3 = vector.load %arg3[%c0_3, %c0_4] : memref<128x64xf32, #tpu.memory_space<vmem>>, vector<128x64xf32>
    %cst = arith.constant dense<0.000000e+00> : vector<256x128xf32>
    %4 = tpu.matmul %2, %3, %cst {dimension_numbers = #tpu.dot_dimension_numbers<[1], [1], [0], [0], [0, 0, 1, 0], [], []>} : vector<256x64xf32>, vector<128x64xf32>, vector<256x128xf32> -> vector<256x128xf32>
    %c0_5 = arith.constant 0 : index
    %c0_6 = arith.constant 0 : index
    %5 = vector.load %arg4[%c0_5, %c0_6] : memref<1x128xf32, #tpu.memory_space<vmem>>, vector<1x128xf32>
    %6 = vector.broadcast %5 : vector<1x128xf32> to vector<256x128xf32>
    %7 = arith.addf %4, %6 : vector<256x128xf32>
    %8 = vector.extract_strided_slice %7 {offsets = [0, 0], sizes = [256, 64], strides = [1, 1]} : vector<256x128xf32> to vector<256x64xf32>
    %9 = arith.negf %8 : vector<256x64xf32>
    %10 = math.exp %9 : vector<256x64xf32>
    %cst_7 = arith.constant 1.000000e+00 : f32
    %11 = vector.broadcast %cst_7 : f32 to vector<256x64xf32>
    %12 = arith.addf %11, %10 : vector<256x64xf32>
    %13 = arith.divf %11, %12 : vector<256x64xf32>
    %14 = vector.extract_strided_slice %13 {offsets = [0, 0], sizes = [256, 32], strides = [1, 1]} : vector<256x64xf32> to vector<256x32xf32>
    %15 = vector.extract_strided_slice %13 {offsets = [0, 32], sizes = [256, 32], strides = [1, 1]} : vector<256x64xf32> to vector<256x32xf32>
    %16 = vector.extract_strided_slice %7 {offsets = [0, 64], sizes = [256, 32], strides = [1, 1]} : vector<256x128xf32> to vector<256x32xf32>
    %17 = vector.extract_strided_slice %7 {offsets = [0, 96], sizes = [256, 32], strides = [1, 1]} : vector<256x128xf32> to vector<256x32xf32>
    %18 = arith.mulf %14, %17 : vector<256x32xf32>
    %19 = arith.addf %16, %18 : vector<256x32xf32>
    %20 = math.tanh %19 : vector<256x32xf32>
    %21 = arith.subf %1, %20 : vector<256x32xf32>
    %22 = arith.mulf %15, %21 : vector<256x32xf32>
    %23 = arith.addf %20, %22 : vector<256x32xf32>
    %c0_8 = arith.constant 0 : index
    %c0_9 = arith.constant 0 : index
    %24 = vector.load %arg5[%c0_8, %c0_9] : memref<256x32xf32, #tpu.memory_space<vmem>>, vector<256x32xf32>
    tpu.vector_store %arg5[%c0_8, %c0_9], %23 {strides = array<i32>} : memref<256x32xf32, #tpu.memory_space<vmem>>, vector<256x32xf32>,
    return
  }
  func.func @transform_0(%arg0: i32) -> (i32, i32) {
    %c0_i32 = arith.constant 0 : i32
    %c0_i32_0 = arith.constant 0 : i32
    return %arg0, %c0_i32 : i32, i32
  }
  func.func @transform_1(%arg0: i32) -> (i32, i32) {
    %c0_i32 = arith.constant 0 : i32
    %c0_i32_0 = arith.constant 0 : i32
    return %arg0, %c0_i32 : i32, i32
  }
  func.func @transform_2(%arg0: i32) -> (i32, i32) {
    %c0_i32 = arith.constant 0 : i32
    %c0_i32_0 = arith.constant 0 : i32
    %c0_i32_1 = arith.constant 0 : i32
    return %c0_i32, %c0_i32_0 : i32, i32
  }
  func.func @transform_3(%arg0: i32) -> (i32, i32) {
    %c0_i32 = arith.constant 0 : i32
    %c0_i32_0 = arith.constant 0 : i32
    %c0_i32_1 = arith.constant 0 : i32
    return %c0_i32, %c0_i32_0 : i32, i32
  }
  func.func @transform_4(%arg0: i32) -> (i32, i32) {
    %c0_i32 = arith.constant 0 : i32
    %c0_i32_0 = arith.constant 0 : i32
    return %arg0, %c0_i32 : i32, i32
  }
}

</mosaic_0001>

<llo_original>
// kernel: tpu_custom_call.1
$region0: #{tpu_custom_call.1}
  #allocation0 [shape = 'u32[]', space=smem, size = 0x4, offset = 0x4, fixed_abs, tag = 'smem constant byte address 0x4 - core index']
  #allocation1 [shape = 'u32[144,128]{1,0:T(1,128)}', space=vmem, size = 0x12000, scoped, tag = 'internal scratch']
  %s0 = inlined_call_operand.vmem [shape: f32[256,32], index: 0, kind: input, shape index: {}]
  %s1 = inlined_call_operand.vmem [shape: f32[256,32], index: 1, kind: input, shape index: {}]
  %s2 = inlined_call_operand.vmem [shape: f32[128,64], index: 2, kind: input, shape index: {}]
  %s3 = inlined_call_operand.vmem [shape: f32[1,128], index: 3, kind: input, shape index: {}]
  %s4 = inlined_call_operand.vmem [shape: f32[256,32], index: 4, kind: output, shape index: {}]
  %s5 = sld [smem:[#allocation0]]
  $region26: #{tpu_custom_call.1} parent=0
    _
  %s7 = ssub.s32 1, %s5
  %s8 = scalar_select 0, %s7, %s5
  // Predicated region
  $region2: #{tpu_custom_call.1} parent=0 // pred_check
    _
  $region3: #{tpu_custom_call.1} parent=0 // pred_check_branch
    %10 = sbr.rel (0) target = $region5
  $region4: #{tpu_custom_call.1} parent=0 // pred_region
    _
  $region5: #{tpu_custom_call.1} parent=0 // pred_fallthru
    _
  // Predicated region
  $region6: #{tpu_custom_call.1} parent=0 // pred_check
    _
  $region7: #{tpu_custom_call.1} parent=0 // pred_check_branch
    %12 = sbr.rel (0) target = $region9
  $region8: #{tpu_custom_call.1} parent=0 // pred_region
    _
  $region9: #{tpu_custom_call.1} parent=0 // pred_fallthru
    _
  // Predicated region
  $region10: #{tpu_custom_call.1} parent=0 // pred_check
    _
  $region11: #{tpu_custom_call.1} parent=0 // pred_check_branch
    %14 = sbr.rel (0) target = $region13
  $region12: #{tpu_custom_call.1} parent=0 // pred_region
    _
  $region13: #{tpu_custom_call.1} parent=0 // pred_fallthru
    _
  // Predicated region
  $region14: #{tpu_custom_call.1} parent=0 // pred_check
    _
  $region15: #{tpu_custom_call.1} parent=0 // pred_check_branch
    %16 = sbr.rel (0) target = $region17
  $region16: #{tpu_custom_call.1} parent=0 // pred_region
    _
  $region17: #{tpu_custom_call.1} parent=0 // pred_fallthru
    _
  %v17 = vld [vmem:[%s0] sm:$0xff]
  %v18 = vld [vmem:[%s0 + $0x8] sm:$0xff]
  %v19 = vld [vmem:[%s0 + $0x10] sm:$0xff]
  %v20 = vld [vmem:[%s0 + $0x18] sm:$0xff]
  %v21 = vld [vmem:[%s0 + $0x20] sm:$0xff]
  %v22 = vld [vmem:[%s0 + $0x28] sm:$0xff]
  %v23 = vld [vmem:[%s0 + $0x30] sm:$0xff]
  %v24 = vld [vmem:[%s0 + $0x38] sm:$0xff]
  %v25 = vld [vmem:[%s0 + $0x40] sm:$0xff]
  %v26 = vld [vmem:[%s0 + $0x48] sm:$0xff]
  %v27 = vld [vmem:[%s0 + $0x50] sm:$0xff]
  %v28 = vld [vmem:[%s0 + $0x58] sm:$0xff]
  %v29 = vld [vmem:[%s0 + $0x60] sm:$0xff]
  %v30 = vld [vmem:[%s0 + $0x68] sm:$0xff]
  %v31 = vld [vmem:[%s0 + $0x70] sm:$0xff]
  %v32 = vld [vmem:[%s0 + $0x78] sm:$0xff]
  %v33 = vld [vmem:[%s0 + $0x80] sm:$0xff]
  %v34 = vld [vmem:[%s0 + $0x88] sm:$0xff]
  %v35 = vld [vmem:[%s0 + $0x90] sm:$0xff]
  %v36 = vld [vmem:[%s0 + $0x98] sm:$0xff]
  %v37 = vld [vmem:[%s0 + $0xa0] sm:$0xff]
  %v38 = vld [vmem:[%s0 + $0xa8] sm:$0xff]
  %v39 = vld [vmem:[%s0 + $0xb0] sm:$0xff]
  %v40 = vld [vmem:[%s0 + $0xb8] sm:$0xff]
  %v41 = vld [vmem:[%s0 + $0xc0] sm:$0xff]
  %v42 = vld [vmem:[%s0 + $0xc8] sm:$0xff]
  %v43 = vld [vmem:[%s0 + $0xd0] sm:$0xff]
  %v44 = vld [vmem:[%s0 + $0xd8] sm:$0xff]
  %v45 = vld [vmem:[%s0 + $0xe0] sm:$0xff]
  %v46 = vld [vmem:[%s0 + $0xe8] sm:$0xff]
  %v47 = vld [vmem:[%s0 + $0xf0] sm:$0xff]
  %v48 = vld [vmem:[%s0 + $0xf8] sm:$0xff]
  %v49 = vld [vmem:[%s1] sm:$0xff]
  %v50 = vld [vmem:[%s1 + $0x8] sm:$0xff]
  %v51 = vld [vmem:[%s1 + $0x10] sm:$0xff]
  %v52 = vld [vmem:[%s1 + $0x18] sm:$0xff]
  %v53 = vld [vmem:[%s1 + $0x20] sm:$0xff]
  %v54 = vld [vmem:[%s1 + $0x28] sm:$0xff]
  %v55 = vld [vmem:[%s1 + $0x30] sm:$0xff]
  %v56 = vld [vmem:[%s1 + $0x38] sm:$0xff]
  %v57 = vld [vmem:[%s1 + $0x40] sm:$0xff]
  %v58 = vld [vmem:[%s1 + $0x48] sm:$0xff]
  %v59 = vld [vmem:[%s1 + $0x50] sm:$0xff]
  %v60 = vld [vmem:[%s1 + $0x58] sm:$0xff]
  %v61 = vld [vmem:[%s1 + $0x60] sm:$0xff]
  %v62 = vld [vmem:[%s1 + $0x68] sm:$0xff]
  %v63 = vld [vmem:[%s1 + $0x70] sm:$0xff]
  %v64 = vld [vmem:[%s1 + $0x78] sm:$0xff]
  %v65 = vld [vmem:[%s1 + $0x80] sm:$0xff]
  %v66 = vld [vmem:[%s1 + $0x88] sm:$0xff]
  %v67 = vld [vmem:[%s1 + $0x90] sm:$0xff]
  %v68 = vld [vmem:[%s1 + $0x98] sm:$0xff]
  %v69 = vld [vmem:[%s1 + $0xa0] sm:$0xff]
  %v70 = vld [vmem:[%s1 + $0xa8] sm:$0xff]
  %v71 = vld [vmem:[%s1 + $0xb0] sm:$0xff]
  %v72 = vld [vmem:[%s1 + $0xb8] sm:$0xff]
  %v73 = vld [vmem:[%s1 + $0xc0] sm:$0xff]
  %v74 = vld [vmem:[%s1 + $0xc8] sm:$0xff]
  %v75 = vld [vmem:[%s1 + $0xd0] sm:$0xff]
  %v76 = vld [vmem:[%s1 + $0xd8] sm:$0xff]
  %v77 = vld [vmem:[%s1 + $0xe0] sm:$0xff]
  %v78 = vld [vmem:[%s1 + $0xe8] sm:$0xff]
  %v79 = vld [vmem:[%s1 + $0xf0] sm:$0xff]
  %v80 = vld [vmem:[%s1 + $0xf8] sm:$0xff]
  %113 = vrot.lane.b32.xlu0 %v49, 32
  %v114 = vpop.permute.xlu0 %113
  %115 = vrot.lane.b32.xlu0 %v50, 32
  %v116 = vpop.permute.xlu0 %115
  %117 = vrot.lane.b32.xlu0 %v51, 32
  %v118 = vpop.permute.xlu0 %117
  %119 = vrot.lane.b32.xlu0 %v52, 32
  %v120 = vpop.permute.xlu0 %119
  %121 = vrot.lane.b32.xlu0 %v53, 32
  %v122 = vpop.permute.xlu0 %121
  %123 = vrot.lane.b32.xlu0 %v54, 32
  %v124 = vpop.permute.xlu0 %123
  %125 = vrot.lane.b32.xlu0 %v55, 32
  %v126 = vpop.permute.xlu0 %125
  %127 = vrot.lane.b32.xlu0 %v56, 32
  %v128 = vpop.permute.xlu0 %127
  %129 = vrot.lane.b32.xlu0 %v57, 32
  %v130 = vpop.permute.xlu0 %129
  %131 = vrot.lane.b32.xlu0 %v58, 32
  %v132 = vpop.permute.xlu0 %131
  %133 = vrot.lane.b32.xlu0 %v59, 32
  %v134 = vpop.permute.xlu0 %133
  %135 = vrot.lane.b32.xlu0 %v60, 32
  %v136 = vpop.permute.xlu0 %135
  %137 = vrot.lane.b32.xlu0 %v61, 32
  %v138 = vpop.permute.xlu0 %137
  %139 = vrot.lane.b32.xlu0 %v62, 32
  %v140 = vpop.permute.xlu0 %139
  %141 = vrot.lane.b32.xlu0 %v63, 32
  %v142 = vpop.permute.xlu0 %141
  %143 = vrot.lane.b32.xlu0 %v64, 32
  %v144 = vpop.permute.xlu0 %143
  %145 = vrot.lane.b32.xlu0 %v65, 32
  %v146 = vpop.permute.xlu0 %145
  %147 = vrot.lane.b32.xlu0 %v66, 32
  %v148 = vpop.permute.xlu0 %147
  %149 = vrot.lane.b32.xlu0 %v67, 32
  %v150 = vpop.permute.xlu0 %149
  %151 = vrot.lane.b32.xlu0 %v68, 32
  %v152 = vpop.permute.xlu0 %151
  %153 = vrot.lane.b32.xlu0 %v69, 32
  %v154 = vpop.permute.xlu0 %153
  %155 = vrot.lane.b32.xlu0 %v70, 32
  %v156 = vpop.permute.xlu0 %155
  %157 = vrot.lane.b32.xlu0 %v71, 32
  %v158 = vpop.permute.xlu0 %157
  %159 = vrot.lane.b32.xlu0 %v72, 32
  %v160 = vpop.permute.xlu0 %159
  %161 = vrot.lane.b32.xlu0 %v73, 32
  %v162 = vpop.permute.xlu0 %161
  %163 = vrot.lane.b32.xlu0 %v74, 32
  %v164 = vpop.permute.xlu0 %163
  %165 = vrot.lane.b32.xlu0 %v75, 32
  %v166 = vpop.permute.xlu0 %165
  %167 = vrot.lane.b32.xlu0 %v76, 32
  %v168 = vpop.permute.xlu0 %167
  %169 = vrot.lane.b32.xlu0 %v77, 32
  %v170 = vpop.permute.xlu0 %169
  %171 = vrot.lane.b32.xlu0 %v78, 32
  %v172 = vpop.permute.xlu0 %171
  %173 = vrot.lane.b32.xlu0 %v79, 32
  %v174 = vpop.permute.xlu0 %173
  %175 = vrot.lane.b32.xlu0 %v80, 32
  %v176 = vpop.permute.xlu0 %175
  %vm209 = vcmask 261120
  %v210 = vsel %vm209, %v17, %v114
  %v211 = vsel %vm209, %v18, %v116
  %v212 = vsel %vm209, %v19, %v118
  %v213 = vsel %vm209, %v20, %v120
  %v214 = vsel %vm209, %v21, %v122
  %v215 = vsel %vm209, %v22, %v124
  %v216 = vsel %vm209, %v23, %v126
  %v217 = vsel %vm209, %v24, %v128
  %v218 = vsel %vm209, %v25, %v130
  %v219 = vsel %vm209, %v26, %v132
  %v220 = vsel %vm209, %v27, %v134
  %v221 = vsel %vm209, %v28, %v136
  %v222 = vsel %vm209, %v29, %v138
  %v223 = vsel %vm209, %v30, %v140
  %v224 = vsel %vm209, %v31, %v142
  %v225 = vsel %vm209, %v32, %v144
  %v226 = vsel %vm209, %v33, %v146
  %v227 = vsel %vm209, %v34, %v148
  %v228 = vsel %vm209, %v35, %v150
  %v229 = vsel %vm209, %v36, %v152
  %v230 = vsel %vm209, %v37, %v154
  %v231 = vsel %vm209, %v38, %v156
  %v232 = vsel %vm209, %v39, %v158
  %v233 = vsel %vm209, %v40, %v160
  %v234 = vsel %vm209, %v41, %v162
  %v235 = vsel %vm209, %v42, %v164
  %v236 = vsel %vm209, %v43, %v166
  %v237 = vsel %vm209, %v44, %v168
  %v238 = vsel %vm209, %v45, %v170
  %v239 = vsel %vm209, %v46, %v172
  %v240 = vsel %vm209, %v47, %v174
  %v241 = vsel %vm209, %v48, %v176
  %v242 = vld [vmem:[%s2] sm:$0xff]
  %v243 = vld [vmem:[%s2 + $0x8] sm:$0xff]
  %v244 = vld [vmem:[%s2 + $0x10] sm:$0xff]
  %v245 = vld [vmem:[%s2 + $0x18] sm:$0xff]
  %v246 = vld [vmem:[%s2 + $0x20] sm:$0xff]
  %v247 = vld [vmem:[%s2 + $0x28] sm:$0xff]
  %v248 = vld [vmem:[%s2 + $0x30] sm:$0xff]
  %v249 = vld [vmem:[%s2 + $0x38] sm:$0xff]
  %v250 = vld [vmem:[%s2 + $0x40] sm:$0xff]
  %v251 = vld [vmem:[%s2 + $0x48] sm:$0xff]
  %v252 = vld [vmem:[%s2 + $0x50] sm:$0xff]
  %v253 = vld [vmem:[%s2 + $0x58] sm:$0xff]
  %v254 = vld [vmem:[%s2 + $0x60] sm:$0xff]
  %v255 = vld [vmem:[%s2 + $0x68] sm:$0xff]
  %v256 = vld [vmem:[%s2 + $0x70] sm:$0xff]
  %v257 = vld [vmem:[%s2 + $0x78] sm:$0xff]
  %v258 = vld [vmem:[%s3] sm:$0x1]
  %v260 = vlaneseq
  %v261 = vshrl.u32 %v260, 7
  %v262 = vsub.s32 0, %v261
  %v263 = vrot.slane %v258, %v262
  %vm265 = vcmask 523264
  %v267 = vsel %vm265, %v210, 0
  %v270 = vsel %vm265, %v211, 0
  %v273 = vsel %vm265, %v212, 0
  %v276 = vsel %vm265, %v213, 0
  %v279 = vsel %vm265, %v214, 0
  %v282 = vsel %vm265, %v215, 0
  %v285 = vsel %vm265, %v216, 0
  %v288 = vsel %vm265, %v217, 0
  %v291 = vsel %vm265, %v218, 0
  %v294 = vsel %vm265, %v219, 0
  %v297 = vsel %vm265, %v220, 0
  %v300 = vsel %vm265, %v221, 0
  %v303 = vsel %vm265, %v222, 0
  %v306 = vsel %vm265, %v223, 0
  %v309 = vsel %vm265, %v224, 0
  %v312 = vsel %vm265, %v225, 0
  %v315 = vsel %vm265, %v226, 0
  %v318 = vsel %vm265, %v227, 0
  %v321 = vsel %vm265, %v228, 0
  %v324 = vsel %vm265, %v229, 0
  %v327 = vsel %vm265, %v230, 0
  %v330 = vsel %vm265, %v231, 0
  %v333 = vsel %vm265, %v232, 0
  %v336 = vsel %vm265, %v233, 0
  %v339 = vsel %vm265, %v234, 0
  %v342 = vsel %vm265, %v235, 0
  %v345 = vsel %vm265, %v236, 0
  %v348 = vsel %vm265, %v237, 0
  %v351 = vsel %vm265, %v238, 0
  %v354 = vsel %vm265, %v239, 0
  %v357 = vsel %vm265, %v240, 0
  %v360 = vsel %vm265, %v241, 0
  %v363 = vsel %vm265, %v242, 0
  %v366 = vsel %vm265, %v243, 0
  %v369 = vsel %vm265, %v244, 0
  %v372 = vsel %vm265, %v245, 0
  %v375 = vsel %vm265, %v246, 0
  %v378 = vsel %vm265, %v247, 0
  %v381 = vsel %vm265, %v248, 0
  %v384 = vsel %vm265, %v249, 0
  %v387 = vsel %vm265, %v250, 0
  %v390 = vsel %vm265, %v251, 0
  %v393 = vsel %vm265, %v252, 0
  %v396 = vsel %vm265, %v253, 0
  %v399 = vsel %vm265, %v254, 0
  %v402 = vsel %vm265, %v255, 0
  %v405 = vsel %vm265, %v256, 0
  %v408 = vsel %vm265, %v257, 0
  %410 = vmatprep.subr.mxu0 0.0
  %411 = vmatpush1.xpose.msra.mxu0 %v408
  %412 = vmatprep.subr.mxu0 0.0
  %413 = vmatpush1.xpose.msra.mxu0 %v405
  %414 = vmatprep.subr.mxu0 0.0
  %415 = vmatpush1.xpose.msra.mxu0 %v402
  %416 = vmatprep.subr.mxu0 0.0
  %417 = vmatpush1.xpose.msra.mxu0 %v399
  %418 = vmatprep.subr.mxu0 0.0
  %419 = vmatpush1.xpose.msra.mxu0 %v396
  %420 = vmatprep.subr.mxu0 0.0
  %421 = vmatpush1.xpose.msra.mxu0 %v393
  %422 = vmatprep.subr.mxu0 0.0
  %423 = vmatpush1.xpose.msra.mxu0 %v390
  %424 = vmatprep.subr.mxu0 0.0
  %425 = vmatpush1.xpose.msra.mxu0 %v387
  %426 = vmatprep.subr.mxu0 0.0
  %427 = vmatpush1.xpose.msra.mxu0 %v384
  %428 = vmatprep.subr.mxu0 0.0
  %429 = vmatpush1.xpose.msra.mxu0 %v381
  %430 = vmatprep.subr.mxu0 0.0
  %431 = vmatpush1.xpose.msra.mxu0 %v378
  %432 = vmatprep.subr.mxu0 0.0
  %433 = vmatpush1.xpose.msra.mxu0 %v375
  %434 = vmatprep.subr.mxu0 0.0
  %435 = vmatpush1.xpose.msra.mxu0 %v372
  %436 = vmatprep.subr.mxu0 0.0
  %437 = vmatpush1.xpose.msra.mxu0 %v369
  %438 = vmatprep.subr.mxu0 0.0
  %439 = vmatpush1.xpose.msra.mxu0 %v366
  %440 = vmatprep.subr.mxu0 0.0
  %441 = vmatpush1.xpose.msra.mxu0 %v363
  %442 = vmatprep.subr.mxu0 0.0
  %443 = vmatpush2.xpose.msra.mxu0 0.0
  %444 = vmatprep.subr.mxu0 0.0
  %445 = vmatpush2.xpose.msra.mxu0 0.0
  %446 = vmatprep.subr.mxu0 0.0
  %447 = vmatpush2.xpose.msra.mxu0 0.0
  %448 = vmatprep.subr.mxu0 0.0
  %449 = vmatpush2.xpose.msra.mxu0 0.0
  %450 = vmatprep.subr.mxu0 0.0
  %451 = vmatpush2.xpose.msra.mxu0 0.0
  %452 = vmatprep.subr.mxu0 0.0
  %453 = vmatpush2.xpose.msra.mxu0 0.0
  %454 = vmatprep.subr.mxu0 0.0
  %455 = vmatpush2.xpose.msra.mxu0 0.0
  %456 = vmatprep.subr.mxu0 0.0
  %457 = vmatpush2.xpose.msra.mxu0 0.0
  %458 = vmatprep.subr.mxu0 0.0
  %459 = vmatpush2.xpose.msra.mxu0 0.0
  %460 = vmatprep.subr.mxu0 0.0
  %461 = vmatpush2.xpose.msra.mxu0 0.0
  %462 = vmatprep.subr.mxu0 0.0
  %463 = vmatpush2.xpose.msra.mxu0 0.0
  %464 = vmatprep.subr.mxu0 0.0
  %465 = vmatpush2.xpose.msra.mxu0 0.0
  %466 = vmatprep.subr.mxu0 0.0
  %467 = vmatpush2.xpose.msra.mxu0 0.0
  %468 = vmatprep.subr.mxu0 0.0
  %469 = vmatpush2.xpose.msra.mxu0 0.0
  %470 = vmatprep.subr.mxu0 0.0
  %471 = vmatpush2.xpose.msra.mxu0 0.0
  %472 = vmatprep.subr.mxu0 0.0
  %473 = vmatpush2.xpose.msra.mxu0 0.0
  %474 = vmatprep.mubr.f32.mxu0 0.0
  %475 = vmatmul.mubr.f32.gmra.mxu0 %v267
  %v476 = vpop.f32.mrf.mxu0
  %v477 = vadd.f32 %v263, %v476
  %v478 = vpop.f32.mrf.mxu0
  %479 = vmatprep.mubr.f32.mxu0 0.0
  %480 = vmatmul.mubr.f32.gmra.mxu0 %v270
  %v481 = vpop.f32.mrf.mxu0
  %v482 = vadd.f32 %v263, %v481
  %v483 = vpop.f32.mrf.mxu0
  %484 = vmatprep.mubr.f32.mxu0 0.0
  %485 = vmatmul.mubr.f32.gmra.mxu0 %v273
  %v486 = vpop.f32.mrf.mxu0
  %v487 = vadd.f32 %v263, %v486
  %v488 = vpop.f32.mrf.mxu0
  %489 = vmatprep.mubr.f32.mxu0 0.0
  %490 = vmatmul.mubr.f32.gmra.mxu0 %v276
  %v491 = vpop.f32.mrf.mxu0
  %v492 = vadd.f32 %v263, %v491
  %v493 = vpop.f32.mrf.mxu0
  %494 = vmatprep.mubr.f32.mxu0 0.0
  %495 = vmatmul.mubr.f32.gmra.mxu0 %v279
  %v496 = vpop.f32.mrf.mxu0
  %v497 = vadd.f32 %v263, %v496
  %v498 = vpop.f32.mrf.mxu0
  %499 = vmatprep.mubr.f32.mxu0 0.0
  %500 = vmatmul.mubr.f32.gmra.mxu0 %v282
  %v501 = vpop.f32.mrf.mxu0
  %v502 = vadd.f32 %v263, %v501
  %v503 = vpop.f32.mrf.mxu0
  %504 = vmatprep.mubr.f32.mxu0 0.0
  %505 = vmatmul.mubr.f32.gmra.mxu0 %v285
  %v506 = vpop.f32.mrf.mxu0
  %v507 = vadd.f32 %v263, %v506
  %v508 = vpop.f32.mrf.mxu0
  %509 = vmatprep.mubr.f32.mxu0 0.0
  %510 = vmatmul.mubr.f32.gmra.mxu0 %v288
  %v511 = vpop.f32.mrf.mxu0
  %v512 = vadd.f32 %v263, %v511
  %v513 = vpop.f32.mrf.mxu0
  %514 = vmatprep.mubr.f32.mxu0 0.0
  %515 = vmatmul.mubr.f32.gmra.mxu0 %v291
  %v516 = vpop.f32.mrf.mxu0
  %v517 = vadd.f32 %v263, %v516
  %v518 = vpop.f32.mrf.mxu0
  %519 = vmatprep.mubr.f32.mxu0 0.0
  %520 = vmatmul.mubr.f32.gmra.mxu0 %v294
  %v521 = vpop.f32.mrf.mxu0
  %v522 = vadd.f32 %v263, %v521
  %v523 = vpop.f32.mrf.mxu0
  %524 = vmatprep.mubr.f32.mxu0 0.0
  %525 = vmatmul.mubr.f32.gmra.mxu0 %v297
  %v526 = vpop.f32.mrf.mxu0
  %v527 = vadd.f32 %v263, %v526
  %v528 = vpop.f32.mrf.mxu0
  %529 = vmatprep.mubr.f32.mxu0 0.0
  %530 = vmatmul.mubr.f32.gmra.mxu0 %v300
  %v531 = vpop.f32.mrf.mxu0
  %v532 = vadd.f32 %v263, %v531
  %v533 = vpop.f32.mrf.mxu0
  %534 = vmatprep.mubr.f32.mxu0 0.0
  %535 = vmatmul.mubr.f32.gmra.mxu0 %v303
  %v536 = vpop.f32.mrf.mxu0
  %v537 = vadd.f32 %v263, %v536
  %v538 = vpop.f32.mrf.mxu0
  %539 = vmatprep.mubr.f32.mxu0 0.0
  %540 = vmatmul.mubr.f32.gmra.mxu0 %v306
  %v541 = vpop.f32.mrf.mxu0
  %v542 = vadd.f32 %v263, %v541
  %v543 = vpop.f32.mrf.mxu0
  %544 = vmatprep.mubr.f32.mxu0 0.0
  %545 = vmatmul.mubr.f32.gmra.mxu0 %v309
  %v546 = vpop.f32.mrf.mxu0
  %v547 = vadd.f32 %v263, %v546
  %v548 = vpop.f32.mrf.mxu0
  %549 = vmatprep.mubr.f32.mxu0 0.0
  %550 = vmatmul.mubr.f32.gmra.mxu0 %v312
  %v551 = vpop.f32.mrf.mxu0
  %v552 = vadd.f32 %v263, %v551
  %v553 = vpop.f32.mrf.mxu0
  %554 = vmatprep.mubr.f32.mxu0 0.0
  %555 = vmatmul.mubr.f32.gmra.mxu0 %v315
  %v556 = vpop.f32.mrf.mxu0
  %v557 = vadd.f32 %v263, %v556
  %v558 = vpop.f32.mrf.mxu0
  %559 = vmatprep.mubr.f32.mxu0 0.0
  %560 = vmatmul.mubr.f32.gmra.mxu0 %v318
  %v561 = vpop.f32.mrf.mxu0
  %v562 = vadd.f32 %v263, %v561
  %v563 = vpop.f32.mrf.mxu0
  %564 = vmatprep.mubr.f32.mxu0 0.0
  %565 = vmatmul.mubr.f32.gmra.mxu0 %v321
  %v566 = vpop.f32.mrf.mxu0
  %v567 = vadd.f32 %v263, %v566
  %v568 = vpop.f32.mrf.mxu0
  %569 = vmatprep.mubr.f32.mxu0 0.0
  %570 = vmatmul.mubr.f32.gmra.mxu0 %v324
  %v571 = vpop.f32.mrf.mxu0
  %v572 = vadd.f32 %v263, %v571
  %v573 = vpop.f32.mrf.mxu0
  %574 = vmatprep.mubr.f32.mxu0 0.0
  %575 = vmatmul.mubr.f32.gmra.mxu0 %v327
  %v576 = vpop.f32.mrf.mxu0
  %v577 = vadd.f32 %v263, %v576
  %v578 = vpop.f32.mrf.mxu0
  %579 = vmatprep.mubr.f32.mxu0 0.0
  %580 = vmatmul.mubr.f32.gmra.mxu0 %v330
  %v581 = vpop.f32.mrf.mxu0
  %v582 = vadd.f32 %v263, %v581
  %v583 = vpop.f32.mrf.mxu0
  %584 = vmatprep.mubr.f32.mxu0 0.0
  %585 = vmatmul.mubr.f32.gmra.mxu0 %v333
  %v586 = vpop.f32.mrf.mxu0
  %v587 = vadd.f32 %v263, %v586
  %v588 = vpop.f32.mrf.mxu0
  %589 = vmatprep.mubr.f32.mxu0 0.0
  %590 = vmatmul.mubr.f32.gmra.mxu0 %v336
  %v591 = vpop.f32.mrf.mxu0
  %v592 = vadd.f32 %v263, %v591
  %v593 = vpop.f32.mrf.mxu0
  %594 = vmatprep.mubr.f32.mxu0 0.0
  %595 = vmatmul.mubr.f32.gmra.mxu0 %v339
  %v596 = vpop.f32.mrf.mxu0
  %v597 = vadd.f32 %v263, %v596
  %v598 = vpop.f32.mrf.mxu0
  %599 = vmatprep.mubr.f32.mxu0 0.0
  %600 = vmatmul.mubr.f32.gmra.mxu0 %v342
  %v601 = vpop.f32.mrf.mxu0
  %v602 = vadd.f32 %v263, %v601
  %v603 = vpop.f32.mrf.mxu0
  %604 = vmatprep.mubr.f32.mxu0 0.0
  %605 = vmatmul.mubr.f32.gmra.mxu0 %v345
  %v606 = vpop.f32.mrf.mxu0
  %v607 = vadd.f32 %v263, %v606
  %v608 = vpop.f32.mrf.mxu0
  %609 = vmatprep.mubr.f32.mxu0 0.0
  %610 = vmatmul.mubr.f32.gmra.mxu0 %v348
  %v611 = vpop.f32.mrf.mxu0
  %v612 = vadd.f32 %v263, %v611
  %v613 = vpop.f32.mrf.mxu0
  %614 = vmatprep.mubr.f32.mxu0 0.0
  %615 = vmatmul.mubr.f32.gmra.mxu0 %v351
  %v616 = vpop.f32.mrf.mxu0
  %v617 = vadd.f32 %v263, %v616
  %v618 = vpop.f32.mrf.mxu0
  %619 = vmatprep.mubr.f32.mxu0 0.0
  %620 = vmatmul.mubr.f32.gmra.mxu0 %v354
  %v621 = vpop.f32.mrf.mxu0
  %v622 = vadd.f32 %v263, %v621
  %v623 = vpop.f32.mrf.mxu0
  %624 = vmatprep.mubr.f32.mxu0 0.0
  %625 = vmatmul.mubr.f32.gmra.mxu0 %v357
  %v626 = vpop.f32.mrf.mxu0
  %v627 = vadd.f32 %v263, %v626
  %v628 = vpop.f32.mrf.mxu0
  %629 = vmatprep.mubr.f32.mxu0 0.0
  %630 = vmatmul.mubr.f32.gmra.mxu0 %v360
  %v631 = vpop.f32.mrf.mxu0
  %v632 = vadd.f32 %v263, %v631
  %v633 = vpop.f32.mrf.mxu0
  %634 = vdwg.mxu0
  %v635 = vxor.u32 %v477, 2147483648
  %v636 = vxor.u32 %v482, 2147483648
  %v637 = vxor.u32 %v487, 2147483648
  %v638 = vxor.u32 %v492, 2147483648
  %v639 = vxor.u32 %v497, 2147483648
  %v640 = vxor.u32 %v502, 2147483648
  %v641 = vxor.u32 %v507, 2147483648
  %v642 = vxor.u32 %v512, 2147483648
  %v643 = vxor.u32 %v517, 2147483648
  %v644 = vxor.u32 %v522, 2147483648
  %v645 = vxor.u32 %v527, 2147483648
  %v646 = vxor.u32 %v532, 2147483648
  %v647 = vxor.u32 %v537, 2147483648
  %v648 = vxor.u32 %v542, 2147483648
  %v649 = vxor.u32 %v547, 2147483648
  %v650 = vxor.u32 %v552, 2147483648
  %v651 = vxor.u32 %v557, 2147483648
  %v652 = vxor.u32 %v562, 2147483648
  %v653 = vxor.u32 %v567, 2147483648
  %v654 = vxor.u32 %v572, 2147483648
  %v655 = vxor.u32 %v577, 2147483648
  %v656 = vxor.u32 %v582, 2147483648
  %v657 = vxor.u32 %v587, 2147483648
  %v658 = vxor.u32 %v592, 2147483648
  %v659 = vxor.u32 %v597, 2147483648
  %v660 = vxor.u32 %v602, 2147483648
  %v661 = vxor.u32 %v607, 2147483648
  %v662 = vxor.u32 %v612, 2147483648
  %v663 = vxor.u32 %v617, 2147483648
  %v664 = vxor.u32 %v622, 2147483648
  %v665 = vxor.u32 %v627, 2147483648
  %v666 = vxor.u32 %v632, 2147483648
  %v667 = vmul.f32 %v635, 1.442695
  %v668 = vpow.pop %v667
  %v669 = vmul.f32 %v636, 1.442695
  %v670 = vpow.pop %v669
  %v671 = vmul.f32 %v637, 1.442695
  %v672 = vpow.pop %v671
  %v673 = vmul.f32 %v638, 1.442695
  %v674 = vpow.pop %v673
  %v675 = vmul.f32 %v639, 1.442695
  %v676 = vpow.pop %v675
  %v677 = vmul.f32 %v640, 1.442695
  %v678 = vpow.pop %v677
  %v679 = vmul.f32 %v641, 1.442695
  %v680 = vpow.pop %v679
  %v681 = vmul.f32 %v642, 1.442695
  %v682 = vpow.pop %v681
  %v683 = vmul.f32 %v643, 1.442695
  %v684 = vpow.pop %v683
  %v685 = vmul.f32 %v644, 1.442695
  %v686 = vpow.pop %v685
  %v687 = vmul.f32 %v645, 1.442695
  %v688 = vpow.pop %v687
  %v689 = vmul.f32 %v646, 1.442695
  %v690 = vpow.pop %v689
  %v691 = vmul.f32 %v647, 1.442695
  %v692 = vpow.pop %v691
  %v693 = vmul.f32 %v648, 1.442695
  %v694 = vpow.pop %v693
  %v695 = vmul.f32 %v649, 1.442695
  %v696 = vpow.pop %v695
  %v697 = vmul.f32 %v650, 1.442695
  %v698 = vpow.pop %v697
  %v699 = vmul.f32 %v651, 1.442695
  %v700 = vpow.pop %v699
  %v701 = vmul.f32 %v652, 1.442695
  %v702 = vpow.pop %v701
  %v703 = vmul.f32 %v653, 1.442695
  %v704 = vpow.pop %v703
  %v705 = vmul.f32 %v654, 1.442695
  %v706 = vpow.pop %v705
  %v707 = vmul.f32 %v655, 1.442695
  %v708 = vpow.pop %v707
  %v709 = vmul.f32 %v656, 1.442695
  %v710 = vpow.pop %v709
  %v711 = vmul.f32 %v657, 1.442695
  %v712 = vpow.pop %v711
  %v713 = vmul.f32 %v658, 1.442695
  %v714 = vpow.pop %v713
  %v715 = vmul.f32 %v659, 1.442695
  %v716 = vpow.pop %v715
  %v717 = vmul.f32 %v660, 1.442695
  %v718 = vpow.pop %v717
  %v719 = vmul.f32 %v661, 1.442695
  %v720 = vpow.pop %v719
  %v721 = vmul.f32 %v662, 1.442695
  %v722 = vpow.pop %v721
  %v723 = vmul.f32 %v663, 1.442695
  %v724 = vpow.pop %v723
  %v725 = vmul.f32 %v664, 1.442695
  %v726 = vpow.pop %v725
  %v727 = vmul.f32 %v665, 1.442695
  %v728 = vpow.pop %v727
  %v729 = vmul.f32 %v666, 1.442695
  %v730 = vpow.pop %v729
  %v731 = vadd.f32 %v668, 1.0
  %v732 = vadd.f32 %v670, 1.0
  %v733 = vadd.f32 %v672, 1.0
  %v734 = vadd.f32 %v674, 1.0
  %v735 = vadd.f32 %v676, 1.0
  %v736 = vadd.f32 %v678, 1.0
  %v737 = vadd.f32 %v680, 1.0
  %v738 = vadd.f32 %v682, 1.0
  %v739 = vadd.f32 %v684, 1.0
  %v740 = vadd.f32 %v686, 1.0
  %v741 = vadd.f32 %v688, 1.0
  %v742 = vadd.f32 %v690, 1.0
  %v743 = vadd.f32 %v692, 1.0
  %v744 = vadd.f32 %v694, 1.0
  %v745 = vadd.f32 %v696, 1.0
  %v746 = vadd.f32 %v698, 1.0
  %v747 = vadd.f32 %v700, 1.0
  %v748 = vadd.f32 %v702, 1.0
  %v749 = vadd.f32 %v704, 1.0
  %v750 = vadd.f32 %v706, 1.0
  %v751 = vadd.f32 %v708, 1.0
  %v752 = vadd.f32 %v710, 1.0
  %v753 = vadd.f32 %v712, 1.0
  %v754 = vadd.f32 %v714, 1.0
  %v755 = vadd.f32 %v716, 1.0
  %v756 = vadd.f32 %v718, 1.0
  %v757 = vadd.f32 %v720, 1.0
  %v758 = vadd.f32 %v722, 1.0
  %v759 = vadd.f32 %v724, 1.0
  %v760 = vadd.f32 %v726, 1.0
  %v761 = vadd.f32 %v728, 1.0
  %v762 = vadd.f32 %v730, 1.0
  %v763 = vrcp.pop %v731
  %v764 = vmul.f32 1.0, %v763
  %v765 = vrcp.pop %v732
  %v766 = vmul.f32 1.0, %v765
  %v767 = vrcp.pop %v733
  %v768 = vmul.f32 1.0, %v767
  %v769 = vrcp.pop %v734
  %v770 = vmul.f32 1.0, %v769
  %v771 = vrcp.pop %v735
  %v772 = vmul.f32 1.0, %v771
  %v773 = vrcp.pop %v736
  %v774 = vmul.f32 1.0, %v773
  %v775 = vrcp.pop %v737
  %v776 = vmul.f32 1.0, %v775
  %v777 = vrcp.pop %v738
  %v778 = vmul.f32 1.0, %v777
  %v779 = vrcp.pop %v739
  %v780 = vmul.f32 1.0, %v779
  %v781 = vrcp.pop %v740
  %v782 = vmul.f32 1.0, %v781
  %v783 = vrcp.pop %v741
  %v784 = vmul.f32 1.0, %v783
  %v785 = vrcp.pop %v742
  %v786 = vmul.f32 1.0, %v785
  %v787 = vrcp.pop %v743
  %v788 = vmul.f32 1.0, %v787
  %v789 = vrcp.pop %v744
  %v790 = vmul.f32 1.0, %v789
  %v791 = vrcp.pop %v745
  %v792 = vmul.f32 1.0, %v791
  %v793 = vrcp.pop %v746
  %v794 = vmul.f32 1.0, %v793
  %v795 = vrcp.pop %v747
  %v796 = vmul.f32 1.0, %v795
  %v797 = vrcp.pop %v748
  %v798 = vmul.f32 1.0, %v797
  %v799 = vrcp.pop %v749
  %v800 = vmul.f32 1.0, %v799
  %v801 = vrcp.pop %v750
  %v802 = vmul.f32 1.0, %v801
  %v803 = vrcp.pop %v751
  %v804 = vmul.f32 1.0, %v803
  %v805 = vrcp.pop %v752
  %v806 = vmul.f32 1.0, %v805
  %v807 = vrcp.pop %v753
  %v808 = vmul.f32 1.0, %v807
  %v809 = vrcp.pop %v754
  %v810 = vmul.f32 1.0, %v809
  %v811 = vrcp.pop %v755
  %v812 = vmul.f32 1.0, %v811
  %v813 = vrcp.pop %v756
  %v814 = vmul.f32 1.0, %v813
  %v815 = vrcp.pop %v757
  %v816 = vmul.f32 1.0, %v815
  %v817 = vrcp.pop %v758
  %v818 = vmul.f32 1.0, %v817
  %v819 = vrcp.pop %v759
  %v820 = vmul.f32 1.0, %v819
  %v821 = vrcp.pop %v760
  %v822 = vmul.f32 1.0, %v821
  %v823 = vrcp.pop %v761
  %v824 = vmul.f32 1.0, %v823
  %v825 = vrcp.pop %v762
  %v826 = vmul.f32 1.0, %v825
  %859 = vrot.lane.b32.xlu0 %v477, 32
  %v860 = vpop.permute.xlu0 %859
  %861 = vrot.lane.b32.xlu0 %v482, 32
  %v862 = vpop.permute.xlu0 %861
  %863 = vrot.lane.b32.xlu0 %v487, 32
  %v864 = vpop.permute.xlu0 %863
  %865 = vrot.lane.b32.xlu0 %v492, 32
  %v866 = vpop.permute.xlu0 %865
  %867 = vrot.lane.b32.xlu0 %v497, 32
  %v868 = vpop.permute.xlu0 %867
  %869 = vrot.lane.b32.xlu0 %v502, 32
  %v870 = vpop.permute.xlu0 %869
  %871 = vrot.lane.b32.xlu0 %v507, 32
  %v872 = vpop.permute.xlu0 %871
  %873 = vrot.lane.b32.xlu0 %v512, 32
  %v874 = vpop.permute.xlu0 %873
  %875 = vrot.lane.b32.xlu0 %v517, 32
  %v876 = vpop.permute.xlu0 %875
  %877 = vrot.lane.b32.xlu0 %v522, 32
  %v878 = vpop.permute.xlu0 %877
  %879 = vrot.lane.b32.xlu0 %v527, 32
  %v880 = vpop.permute.xlu0 %879
  %881 = vrot.lane.b32.xlu0 %v532, 32
  %v882 = vpop.permute.xlu0 %881
  %883 = vrot.lane.b32.xlu0 %v537, 32
  %v884 = vpop.permute.xlu0 %883
  %885 = vrot.lane.b32.xlu0 %v542, 32
  %v886 = vpop.permute.xlu0 %885
  %887 = vrot.lane.b32.xlu0 %v547, 32
  %v888 = vpop.permute.xlu0 %887
  %889 = vrot.lane.b32.xlu0 %v552, 32
  %v890 = vpop.permute.xlu0 %889
  %891 = vrot.lane.b32.xlu0 %v557, 32
  %v892 = vpop.permute.xlu0 %891
  %893 = vrot.lane.b32.xlu0 %v562, 32
  %v894 = vpop.permute.xlu0 %893
  %895 = vrot.lane.b32.xlu0 %v567, 32
  %v896 = vpop.permute.xlu0 %895
  %897 = vrot.lane.b32.xlu0 %v572, 32
  %v898 = vpop.permute.xlu0 %897
  %899 = vrot.lane.b32.xlu0 %v577, 32
  %v900 = vpop.permute.xlu0 %899
  %901 = vrot.lane.b32.xlu0 %v582, 32
  %v902 = vpop.permute.xlu0 %901
  %903 = vrot.lane.b32.xlu0 %v587, 32
  %v904 = vpop.permute.xlu0 %903
  %905 = vrot.lane.b32.xlu0 %v592, 32
  %v906 = vpop.permute.xlu0 %905
  %907 = vrot.lane.b32.xlu0 %v597, 32
  %v908 = vpop.permute.xlu0 %907
  %909 = vrot.lane.b32.xlu0 %v602, 32
  %v910 = vpop.permute.xlu0 %909
  %911 = vrot.lane.b32.xlu0 %v607, 32
  %v912 = vpop.permute.xlu0 %911
  %913 = vrot.lane.b32.xlu0 %v612, 32
  %v914 = vpop.permute.xlu0 %913
  %915 = vrot.lane.b32.xlu0 %v617, 32
  %v916 = vpop.permute.xlu0 %915
  %917 = vrot.lane.b32.xlu0 %v622, 32
  %v918 = vpop.permute.xlu0 %917
  %919 = vrot.lane.b32.xlu0 %v627, 32
  %v920 = vpop.permute.xlu0 %919
  %921 = vrot.lane.b32.xlu0 %v632, 32
  %v922 = vpop.permute.xlu0 %921
  %v955 = vmul.f32 %v764, %v860
  %v956 = vmul.f32 %v766, %v862
  %v957 = vmul.f32 %v768, %v864
  %v958 = vmul.f32 %v770, %v866
  %v959 = vmul.f32 %v772, %v868
  %v960 = vmul.f32 %v774, %v870
  %v961 = vmul.f32 %v776, %v872
  %v962 = vmul.f32 %v778, %v874
  %v963 = vmul.f32 %v780, %v876
  %v964 = vmul.f32 %v782, %v878
  %v965 = vmul.f32 %v784, %v880
  %v966 = vmul.f32 %v786, %v882
  %v967 = vmul.f32 %v788, %v884
  %v968 = vmul.f32 %v790, %v886
  %v969 = vmul.f32 %v792, %v888
  %v970 = vmul.f32 %v794, %v890
  %v971 = vmul.f32 %v796, %v892
  %v972 = vmul.f32 %v798, %v894
  %v973 = vmul.f32 %v800, %v896
  %v974 = vmul.f32 %v802, %v898
  %v975 = vmul.f32 %v804, %v900
  %v976 = vmul.f32 %v806, %v902
  %v977 = vmul.f32 %v808, %v904
  %v978 = vmul.f32 %v810, %v906
  %v979 = vmul.f32 %v812, %v908
  %v980 = vmul.f32 %v814, %v910
  %v981 = vmul.f32 %v816, %v912
  %v982 = vmul.f32 %v818, %v914
  %v983 = vmul.f32 %v820, %v916
  %v984 = vmul.f32 %v822, %v918
  %v985 = vmul.f32 %v824, %v920
  %v986 = vmul.f32 %v826, %v922
  %1019 = vrot.lane.b32.xlu0 %v955, 64
  %v1020 = vpop.permute.xlu0 %1019
  %1021 = vrot.lane.b32.xlu0 %v956, 64
  %v1022 = vpop.permute.xlu0 %1021
  %1023 = vrot.lane.b32.xlu0 %v957, 64
  %v1024 = vpop.permute.xlu0 %1023
  %1025 = vrot.lane.b32.xlu0 %v958, 64
  %v1026 = vpop.permute.xlu0 %1025
  %1027 = vrot.lane.b32.xlu0 %v959, 64
  %v1028 = vpop.permute.xlu0 %1027
  %1029 = vrot.lane.b32.xlu0 %v960, 64
  %v1030 = vpop.permute.xlu0 %1029
  %1031 = vrot.lane.b32.xlu0 %v961, 64
  %v1032 = vpop.permute.xlu0 %1031
  %1033 = vrot.lane.b32.xlu0 %v962, 64
  %v1034 = vpop.permute.xlu0 %1033
  %1035 = vrot.lane.b32.xlu0 %v963, 64
  %v1036 = vpop.permute.xlu0 %1035
  %1037 = vrot.lane.b32.xlu0 %v964, 64
  %v1038 = vpop.permute.xlu0 %1037
  %1039 = vrot.lane.b32.xlu0 %v965, 64
  %v1040 = vpop.permute.xlu0 %1039
  %1041 = vrot.lane.b32.xlu0 %v966, 64
  %v1042 = vpop.permute.xlu0 %1041
  %1043 = vrot.lane.b32.xlu0 %v967, 64
  %v1044 = vpop.permute.xlu0 %1043
  %1045 = vrot.lane.b32.xlu0 %v968, 64
  %v1046 = vpop.permute.xlu0 %1045
  %1047 = vrot.lane.b32.xlu0 %v969, 64
  %v1048 = vpop.permute.xlu0 %1047
  %1049 = vrot.lane.b32.xlu0 %v970, 64
  %v1050 = vpop.permute.xlu0 %1049
  %1051 = vrot.lane.b32.xlu0 %v971, 64
  %v1052 = vpop.permute.xlu0 %1051
  %1053 = vrot.lane.b32.xlu0 %v972, 64
  %v1054 = vpop.permute.xlu0 %1053
  %1055 = vrot.lane.b32.xlu0 %v973, 64
  %v1056 = vpop.permute.xlu0 %1055
  %1057 = vrot.lane.b32.xlu0 %v974, 64
  %v1058 = vpop.permute.xlu0 %1057
  %1059 = vrot.lane.b32.xlu0 %v975, 64
  %v1060 = vpop.permute.xlu0 %1059
  %1061 = vrot.lane.b32.xlu0 %v976, 64
  %v1062 = vpop.permute.xlu0 %1061
  %1063 = vrot.lane.b32.xlu0 %v977, 64
  %v1064 = vpop.permute.xlu0 %1063
  %1065 = vrot.lane.b32.xlu0 %v978, 64
  %v1066 = vpop.permute.xlu0 %1065
  %1067 = vrot.lane.b32.xlu0 %v979, 64
  %v1068 = vpop.permute.xlu0 %1067
  %1069 = vrot.lane.b32.xlu0 %v980, 64
  %v1070 = vpop.permute.xlu0 %1069
  %1071 = vrot.lane.b32.xlu0 %v981, 64
  %v1072 = vpop.permute.xlu0 %1071
  %1073 = vrot.lane.b32.xlu0 %v982, 64
  %v1074 = vpop.permute.xlu0 %1073
  %1075 = vrot.lane.b32.xlu0 %v983, 64
  %v1076 = vpop.permute.xlu0 %1075
  %1077 = vrot.lane.b32.xlu0 %v984, 64
  %v1078 = vpop.permute.xlu0 %1077
  %1079 = vrot.lane.b32.xlu0 %v985, 64
  %v1080 = vpop.permute.xlu0 %1079
  %1081 = vrot.lane.b32.xlu0 %v986, 64
  %v1082 = vpop.permute.xlu0 %1081
  %v1115 = vadd.f32 %v477, %v1020
  %v1116 = vadd.f32 %v482, %v1022
  %v1117 = vadd.f32 %v487, %v1024
  %v1118 = vadd.f32 %v492, %v1026
  %v1119 = vadd.f32 %v497, %v1028
  %v1120 = vadd.f32 %v502, %v1030
  %v1121 = vadd.f32 %v507, %v1032
  %v1122 = vadd.f32 %v512, %v1034
  %v1123 = vadd.f32 %v517, %v1036
  %v1124 = vadd.f32 %v522, %v1038
  %v1125 = vadd.f32 %v527, %v1040
  %v1126 = vadd.f32 %v532, %v1042
  %v1127 = vadd.f32 %v537, %v1044
  %v1128 = vadd.f32 %v542, %v1046
  %v1129 = vadd.f32 %v547, %v1048
  %v1130 = vadd.f32 %v552, %v1050
  %v1131 = vadd.f32 %v557, %v1052
  %v1132 = vadd.f32 %v562, %v1054
  %v1133 = vadd.f32 %v567, %v1056
  %v1134 = vadd.f32 %v572, %v1058
  %v1135 = vadd.f32 %v577, %v1060
  %v1136 = vadd.f32 %v582, %v1062
  %v1137 = vadd.f32 %v587, %v1064
  %v1138 = vadd.f32 %v592, %v1066
  %v1139 = vadd.f32 %v597, %v1068
  %v1140 = vadd.f32 %v602, %v1070
  %v1141 = vadd.f32 %v607, %v1072
  %v1142 = vadd.f32 %v612, %v1074
  %v1143 = vadd.f32 %v617, %v1076
  %v1144 = vadd.f32 %v622, %v1078
  %v1145 = vadd.f32 %v627, %v1080
  %v1146 = vadd.f32 %v632, %v1082
  %v1147 = vtanh.pop %v1115
  %v1148 = vtanh.pop %v1116
  %v1149 = vtanh.pop %v1117
  %v1150 = vtanh.pop %v1118
  %v1151 = vtanh.pop %v1119
  %v1152 = vtanh.pop %v1120
  %v1153 = vtanh.pop %v1121
  %v1154 = vtanh.pop %v1122
  %v1155 = vtanh.pop %v1123
  %v1156 = vtanh.pop %v1124
  %v1157 = vtanh.pop %v1125
  %v1158 = vtanh.pop %v1126
  %v1159 = vtanh.pop %v1127
  %v1160 = vtanh.pop %v1128
  %v1161 = vtanh.pop %v1129
  %v1162 = vtanh.pop %v1130
  %v1163 = vtanh.pop %v1131
  %v1164 = vtanh.pop %v1132
  %v1165 = vtanh.pop %v1133
  %v1166 = vtanh.pop %v1134
  %v1167 = vtanh.pop %v1135
  %v1168 = vtanh.pop %v1136
  %v1169 = vtanh.pop %v1137
  %v1170 = vtanh.pop %v1138
  %v1171 = vtanh.pop %v1139
  %v1172 = vtanh.pop %v1140
  %v1173 = vtanh.pop %v1141
  %v1174 = vtanh.pop %v1142
  %v1175 = vtanh.pop %v1143
  %v1176 = vtanh.pop %v1144
  %v1177 = vtanh.pop %v1145
  %v1178 = vtanh.pop %v1146
  %1211 = vrot.lane.b32.xlu0 %v1147, 64
  %v1212 = vpop.permute.xlu0 %1211
  %1213 = vrot.lane.b32.xlu0 %v1148, 64
  %v1214 = vpop.permute.xlu0 %1213
  %1215 = vrot.lane.b32.xlu0 %v1149, 64
  %v1216 = vpop.permute.xlu0 %1215
  %1217 = vrot.lane.b32.xlu0 %v1150, 64
  %v1218 = vpop.permute.xlu0 %1217
  %1219 = vrot.lane.b32.xlu0 %v1151, 64
  %v1220 = vpop.permute.xlu0 %1219
  %1221 = vrot.lane.b32.xlu0 %v1152, 64
  %v1222 = vpop.permute.xlu0 %1221
  %1223 = vrot.lane.b32.xlu0 %v1153, 64
  %v1224 = vpop.permute.xlu0 %1223
  %1225 = vrot.lane.b32.xlu0 %v1154, 64
  %v1226 = vpop.permute.xlu0 %1225
  %1227 = vrot.lane.b32.xlu0 %v1155, 64
  %v1228 = vpop.permute.xlu0 %1227
  %1229 = vrot.lane.b32.xlu0 %v1156, 64
  %v1230 = vpop.permute.xlu0 %1229
  %1231 = vrot.lane.b32.xlu0 %v1157, 64
  %v1232 = vpop.permute.xlu0 %1231
  %1233 = vrot.lane.b32.xlu0 %v1158, 64
  %v1234 = vpop.permute.xlu0 %1233
  %1235 = vrot.lane.b32.xlu0 %v1159, 64
  %v1236 = vpop.permute.xlu0 %1235
  %1237 = vrot.lane.b32.xlu0 %v1160, 64
  %v1238 = vpop.permute.xlu0 %1237
  %1239 = vrot.lane.b32.xlu0 %v1161, 64
  %v1240 = vpop.permute.xlu0 %1239
  %1241 = vrot.lane.b32.xlu0 %v1162, 64
  %v1242 = vpop.permute.xlu0 %1241
  %1243 = vrot.lane.b32.xlu0 %v1163, 64
  %v1244 = vpop.permute.xlu0 %1243
  %1245 = vrot.lane.b32.xlu0 %v1164, 64
  %v1246 = vpop.permute.xlu0 %1245
  %1247 = vrot.lane.b32.xlu0 %v1165, 64
  %v1248 = vpop.permute.xlu0 %1247
  %1249 = vrot.lane.b32.xlu0 %v1166, 64
  %v1250 = vpop.permute.xlu0 %1249
  %1251 = vrot.lane.b32.xlu0 %v1167, 64
  %v1252 = vpop.permute.xlu0 %1251
  %1253 = vrot.lane.b32.xlu0 %v1168, 64
  %v1254 = vpop.permute.xlu0 %1253
  %1255 = vrot.lane.b32.xlu0 %v1169, 64
  %v1256 = vpop.permute.xlu0 %1255
  %1257 = vrot.lane.b32.xlu0 %v1170, 64
  %v1258 = vpop.permute.xlu0 %1257
  %1259 = vrot.lane.b32.xlu0 %v1171, 64
  %v1260 = vpop.permute.xlu0 %1259
  %1261 = vrot.lane.b32.xlu0 %v1172, 64
  %v1262 = vpop.permute.xlu0 %1261
  %1263 = vrot.lane.b32.xlu0 %v1173, 64
  %v1264 = vpop.permute.xlu0 %1263
  %1265 = vrot.lane.b32.xlu0 %v1174, 64
  %v1266 = vpop.permute.xlu0 %1265
  %1267 = vrot.lane.b32.xlu0 %v1175, 64
  %v1268 = vpop.permute.xlu0 %1267
  %1269 = vrot.lane.b32.xlu0 %v1176, 64
  %v1270 = vpop.permute.xlu0 %1269
  %1271 = vrot.lane.b32.xlu0 %v1177, 64
  %v1272 = vpop.permute.xlu0 %1271
  %1273 = vrot.lane.b32.xlu0 %v1178, 64
  %v1274 = vpop.permute.xlu0 %1273
  %v1307 = vsub.f32 %v49, %v1212
  %v1308 = vsub.f32 %v50, %v1214
  %v1309 = vsub.f32 %v51, %v1216
  %v1310 = vsub.f32 %v52, %v1218
  %v1311 = vsub.f32 %v53, %v1220
  %v1312 = vsub.f32 %v54, %v1222
  %v1313 = vsub.f32 %v55, %v1224
  %v1314 = vsub.f32 %v56, %v1226
  %v1315 = vsub.f32 %v57, %v1228
  %v1316 = vsub.f32 %v58, %v1230
  %v1317 = vsub.f32 %v59, %v1232
  %v1318 = vsub.f32 %v60, %v1234
  %v1319 = vsub.f32 %v61, %v1236
  %v1320 = vsub.f32 %v62, %v1238
  %v1321 = vsub.f32 %v63, %v1240
  %v1322 = vsub.f32 %v64, %v1242
  %v1323 = vsub.f32 %v65, %v1244
  %v1324 = vsub.f32 %v66, %v1246
  %v1325 = vsub.f32 %v67, %v1248
  %v1326 = vsub.f32 %v68, %v1250
  %v1327 = vsub.f32 %v69, %v1252
  %v1328 = vsub.f32 %v70, %v1254
  %v1329 = vsub.f32 %v71, %v1256
  %v1330 = vsub.f32 %v72, %v1258
  %v1331 = vsub.f32 %v73, %v1260
  %v1332 = vsub.f32 %v74, %v1262
  %v1333 = vsub.f32 %v75, %v1264
  %v1334 = vsub.f32 %v76, %v1266
  %v1335 = vsub.f32 %v77, %v1268
  %v1336 = vsub.f32 %v78, %v1270
  %v1337 = vsub.f32 %v79, %v1272
  %v1338 = vsub.f32 %v80, %v1274
  %1371 = vrot.lane.b32.xlu0 %v1307, 32
  %v1372 = vpop.permute.xlu0 %1371
  %1373 = vrot.lane.b32.xlu0 %v1308, 32
  %v1374 = vpop.permute.xlu0 %1373
  %1375 = vrot.lane.b32.xlu0 %v1309, 32
  %v1376 = vpop.permute.xlu0 %1375
  %1377 = vrot.lane.b32.xlu0 %v1310, 32
  %v1378 = vpop.permute.xlu0 %1377
  %1379 = vrot.lane.b32.xlu0 %v1311, 32
  %v1380 = vpop.permute.xlu0 %1379
  %1381 = vrot.lane.b32.xlu0 %v1312, 32
  %v1382 = vpop.permute.xlu0 %1381
  %1383 = vrot.lane.b32.xlu0 %v1313, 32
  %v1384 = vpop.permute.xlu0 %1383
  %1385 = vrot.lane.b32.xlu0 %v1314, 32
  %v1386 = vpop.permute.xlu0 %1385
  %1387 = vrot.lane.b32.xlu0 %v1315, 32
  %v1388 = vpop.permute.xlu0 %1387
  %1389 = vrot.lane.b32.xlu0 %v1316, 32
  %v1390 = vpop.permute.xlu0 %1389
  %1391 = vrot.lane.b32.xlu0 %v1317, 32
  %v1392 = vpop.permute.xlu0 %1391
  %1393 = vrot.lane.b32.xlu0 %v1318, 32
  %v1394 = vpop.permute.xlu0 %1393
  %1395 = vrot.lane.b32.xlu0 %v1319, 32
  %v1396 = vpop.permute.xlu0 %1395
  %1397 = vrot.lane.b32.xlu0 %v1320, 32
  %v1398 = vpop.permute.xlu0 %1397
  %1399 = vrot.lane.b32.xlu0 %v1321, 32
  %v1400 = vpop.permute.xlu0 %1399
  %1401 = vrot.lane.b32.xlu0 %v1322, 32
  %v1402 = vpop.permute.xlu0 %1401
  %1403 = vrot.lane.b32.xlu0 %v1323, 32
  %v1404 = vpop.permute.xlu0 %1403
  %1405 = vrot.lane.b32.xlu0 %v1324, 32
  %v1406 = vpop.permute.xlu0 %1405
  %1407 = vrot.lane.b32.xlu0 %v1325, 32
  %v1408 = vpop.permute.xlu0 %1407
  %1409 = vrot.lane.b32.xlu0 %v1326, 32
  %v1410 = vpop.permute.xlu0 %1409
  %1411 = vrot.lane.b32.xlu0 %v1327, 32
  %v1412 = vpop.permute.xlu0 %1411
  %1413 = vrot.lane.b32.xlu0 %v1328, 32
  %v1414 = vpop.permute.xlu0 %1413
  %1415 = vrot.lane.b32.xlu0 %v1329, 32
  %v1416 = vpop.permute.xlu0 %1415
  %1417 = vrot.lane.b32.xlu0 %v1330, 32
  %v1418 = vpop.permute.xlu0 %1417
  %1419 = vrot.lane.b32.xlu0 %v1331, 32
  %v1420 = vpop.permute.xlu0 %1419
  %1421 = vrot.lane.b32.xlu0 %v1332, 32
  %v1422 = vpop.permute.xlu0 %1421
  %1423 = vrot.lane.b32.xlu0 %v1333, 32
  %v1424 = vpop.permute.xlu0 %1423
  %1425 = vrot.lane.b32.xlu0 %v1334, 32
  %v1426 = vpop.permute.xlu0 %1425
  %1427 = vrot.lane.b32.xlu0 %v1335, 32
  %v1428 = vpop.permute.xlu0 %1427
  %1429 = vrot.lane.b32.xlu0 %v1336, 32
  %v1430 = vpop.permute.xlu0 %1429
  %1431 = vrot.lane.b32.xlu0 %v1337, 32
  %v1432 = vpop.permute.xlu0 %1431
  %1433 = vrot.lane.b32.xlu0 %v1338, 32
  %v1434 = vpop.permute.xlu0 %1433
  %v1467 = vmul.f32 %v764, %v1372
  %v1468 = vmul.f32 %v766, %v1374
  %v1469 = vmul.f32 %v768, %v1376
  %v1470 = vmul.f32 %v770, %v1378
  %v1471 = vmul.f32 %v772, %v1380
  %v1472 = vmul.f32 %v774, %v1382
  %v1473 = vmul.f32 %v776, %v1384
  %v1474 = vmul.f32 %v778, %v1386
  %v1475 = vmul.f32 %v780, %v1388
  %v1476 = vmul.f32 %v782, %v1390
  %v1477 = vmul.f32 %v784, %v1392
  %v1478 = vmul.f32 %v786, %v1394
  %v1479 = vmul.f32 %v788, %v1396
  %v1480 = vmul.f32 %v790, %v1398
  %v1481 = vmul.f32 %v792, %v1400
  %v1482 = vmul.f32 %v794, %v1402
  %v1483 = vmul.f32 %v796, %v1404
  %v1484 = vmul.f32 %v798, %v1406
  %v1485 = vmul.f32 %v800, %v1408
  %v1486 = vmul.f32 %v802, %v1410
  %v1487 = vmul.f32 %v804, %v1412
  %v1488 = vmul.f32 %v806, %v1414
  %v1489 = vmul.f32 %v808, %v1416
  %v1490 = vmul.f32 %v810, %v1418
  %v1491 = vmul.f32 %v812, %v1420
  %v1492 = vmul.f32 %v814, %v1422
  %v1493 = vmul.f32 %v816, %v1424
  %v1494 = vmul.f32 %v818, %v1426
  %v1495 = vmul.f32 %v820, %v1428
  %v1496 = vmul.f32 %v822, %v1430
  %v1497 = vmul.f32 %v824, %v1432
  %v1498 = vmul.f32 %v826, %v1434
  %1531 = vrot.lane.b32.xlu0 %v1467, 32
  %v1532 = vpop.permute.xlu0 %1531
  %1533 = vrot.lane.b32.xlu0 %v1468, 32
  %v1534 = vpop.permute.xlu0 %1533
  %1535 = vrot.lane.b32.xlu0 %v1469, 32
  %v1536 = vpop.permute.xlu0 %1535
  %1537 = vrot.lane.b32.xlu0 %v1470, 32
  %v1538 = vpop.permute.xlu0 %1537
  %1539 = vrot.lane.b32.xlu0 %v1471, 32
  %v1540 = vpop.permute.xlu0 %1539
  %1541 = vrot.lane.b32.xlu0 %v1472, 32
  %v1542 = vpop.permute.xlu0 %1541
  %1543 = vrot.lane.b32.xlu0 %v1473, 32
  %v1544 = vpop.permute.xlu0 %1543
  %1545 = vrot.lane.b32.xlu0 %v1474, 32
  %v1546 = vpop.permute.xlu0 %1545
  %1547 = vrot.lane.b32.xlu0 %v1475, 32
  %v1548 = vpop.permute.xlu0 %1547
  %1549 = vrot.lane.b32.xlu0 %v1476, 32
  %v1550 = vpop.permute.xlu0 %1549
  %1551 = vrot.lane.b32.xlu0 %v1477, 32
  %v1552 = vpop.permute.xlu0 %1551
  %1553 = vrot.lane.b32.xlu0 %v1478, 32
  %v1554 = vpop.permute.xlu0 %1553
  %1555 = vrot.lane.b32.xlu0 %v1479, 32
  %v1556 = vpop.permute.xlu0 %1555
  %1557 = vrot.lane.b32.xlu0 %v1480, 32
  %v1558 = vpop.permute.xlu0 %1557
  %1559 = vrot.lane.b32.xlu0 %v1481, 32
  %v1560 = vpop.permute.xlu0 %1559
  %1561 = vrot.lane.b32.xlu0 %v1482, 32
  %v1562 = vpop.permute.xlu0 %1561
  %1563 = vrot.lane.b32.xlu0 %v1483, 32
  %v1564 = vpop.permute.xlu0 %1563
  %1565 = vrot.lane.b32.xlu0 %v1484, 32
  %v1566 = vpop.permute.xlu0 %1565
  %1567 = vrot.lane.b32.xlu0 %v1485, 32
  %v1568 = vpop.permute.xlu0 %1567
  %1569 = vrot.lane.b32.xlu0 %v1486, 32
  %v1570 = vpop.permute.xlu0 %1569
  %1571 = vrot.lane.b32.xlu0 %v1487, 32
  %v1572 = vpop.permute.xlu0 %1571
  %1573 = vrot.lane.b32.xlu0 %v1488, 32
  %v1574 = vpop.permute.xlu0 %1573
  %1575 = vrot.lane.b32.xlu0 %v1489, 32
  %v1576 = vpop.permute.xlu0 %1575
  %1577 = vrot.lane.b32.xlu0 %v1490, 32
  %v1578 = vpop.permute.xlu0 %1577
  %1579 = vrot.lane.b32.xlu0 %v1491, 32
  %v1580 = vpop.permute.xlu0 %1579
  %1581 = vrot.lane.b32.xlu0 %v1492, 32
  %v1582 = vpop.permute.xlu0 %1581
  %1583 = vrot.lane.b32.xlu0 %v1493, 32
  %v1584 = vpop.permute.xlu0 %1583
  %1585 = vrot.lane.b32.xlu0 %v1494, 32
  %v1586 = vpop.permute.xlu0 %1585
  %1587 = vrot.lane.b32.xlu0 %v1495, 32
  %v1588 = vpop.permute.xlu0 %1587
  %1589 = vrot.lane.b32.xlu0 %v1496, 32
  %v1590 = vpop.permute.xlu0 %1589
  %1591 = vrot.lane.b32.xlu0 %v1497, 32
  %v1592 = vpop.permute.xlu0 %1591
  %1593 = vrot.lane.b32.xlu0 %v1498, 32
  %v1594 = vpop.permute.xlu0 %1593
  %v1627 = vadd.f32 %v1147, %v1532
  %v1628 = vadd.f32 %v1148, %v1534
  %v1629 = vadd.f32 %v1149, %v1536
  %v1630 = vadd.f32 %v1150, %v1538
  %v1631 = vadd.f32 %v1151, %v1540
  %v1632 = vadd.f32 %v1152, %v1542
  %v1633 = vadd.f32 %v1153, %v1544
  %v1634 = vadd.f32 %v1154, %v1546
  %v1635 = vadd.f32 %v1155, %v1548
  %v1636 = vadd.f32 %v1156, %v1550
  %v1637 = vadd.f32 %v1157, %v1552
  %v1638 = vadd.f32 %v1158, %v1554
  %v1639 = vadd.f32 %v1159, %v1556
  %v1640 = vadd.f32 %v1160, %v1558
  %v1641 = vadd.f32 %v1161, %v1560
  %v1642 = vadd.f32 %v1162, %v1562
  %v1643 = vadd.f32 %v1163, %v1564
  %v1644 = vadd.f32 %v1164, %v1566
  %v1645 = vadd.f32 %v1165, %v1568
  %v1646 = vadd.f32 %v1166, %v1570
  %v1647 = vadd.f32 %v1167, %v1572
  %v1648 = vadd.f32 %v1168, %v1574
  %v1649 = vadd.f32 %v1169, %v1576
  %v1650 = vadd.f32 %v1170, %v1578
  %v1651 = vadd.f32 %v1171, %v1580
  %v1652 = vadd.f32 %v1172, %v1582
  %v1653 = vadd.f32 %v1173, %v1584
  %v1654 = vadd.f32 %v1174, %v1586
  %v1655 = vadd.f32 %v1175, %v1588
  %v1656 = vadd.f32 %v1176, %v1590
  %v1657 = vadd.f32 %v1177, %v1592
  %v1658 = vadd.f32 %v1178, %v1594
  %1691 = vrot.lane.b32.xlu0 %v1627, 64
  %v1692 = vpop.permute.xlu0 %1691
  %1693 = vrot.lane.b32.xlu0 %v1628, 64
  %v1694 = vpop.permute.xlu0 %1693
  %1695 = vrot.lane.b32.xlu0 %v1629, 64
  %v1696 = vpop.permute.xlu0 %1695
  %1697 = vrot.lane.b32.xlu0 %v1630, 64
  %v1698 = vpop.permute.xlu0 %1697
  %1699 = vrot.lane.b32.xlu0 %v1631, 64
  %v1700 = vpop.permute.xlu0 %1699
  %1701 = vrot.lane.b32.xlu0 %v1632, 64
  %v1702 = vpop.permute.xlu0 %1701
  %1703 = vrot.lane.b32.xlu0 %v1633, 64
  %v1704 = vpop.permute.xlu0 %1703
  %1705 = vrot.lane.b32.xlu0 %v1634, 64
  %v1706 = vpop.permute.xlu0 %1705
  %1707 = vrot.lane.b32.xlu0 %v1635, 64
  %v1708 = vpop.permute.xlu0 %1707
  %1709 = vrot.lane.b32.xlu0 %v1636, 64
  %v1710 = vpop.permute.xlu0 %1709
  %1711 = vrot.lane.b32.xlu0 %v1637, 64
  %v1712 = vpop.permute.xlu0 %1711
  %1713 = vrot.lane.b32.xlu0 %v1638, 64
  %v1714 = vpop.permute.xlu0 %1713
  %1715 = vrot.lane.b32.xlu0 %v1639, 64
  %v1716 = vpop.permute.xlu0 %1715
  %1717 = vrot.lane.b32.xlu0 %v1640, 64
  %v1718 = vpop.permute.xlu0 %1717
  %1719 = vrot.lane.b32.xlu0 %v1641, 64
  %v1720 = vpop.permute.xlu0 %1719
  %1721 = vrot.lane.b32.xlu0 %v1642, 64
  %v1722 = vpop.permute.xlu0 %1721
  %1723 = vrot.lane.b32.xlu0 %v1643, 64
  %v1724 = vpop.permute.xlu0 %1723
  %1725 = vrot.lane.b32.xlu0 %v1644, 64
  %v1726 = vpop.permute.xlu0 %1725
  %1727 = vrot.lane.b32.xlu0 %v1645, 64
  %v1728 = vpop.permute.xlu0 %1727
  %1729 = vrot.lane.b32.xlu0 %v1646, 64
  %v1730 = vpop.permute.xlu0 %1729
  %1731 = vrot.lane.b32.xlu0 %v1647, 64
  %v1732 = vpop.permute.xlu0 %1731
  %1733 = vrot.lane.b32.xlu0 %v1648, 64
  %v1734 = vpop.permute.xlu0 %1733
  %1735 = vrot.lane.b32.xlu0 %v1649, 64
  %v1736 = vpop.permute.xlu0 %1735
  %1737 = vrot.lane.b32.xlu0 %v1650, 64
  %v1738 = vpop.permute.xlu0 %1737
  %1739 = vrot.lane.b32.xlu0 %v1651, 64
  %v1740 = vpop.permute.xlu0 %1739
  %1741 = vrot.lane.b32.xlu0 %v1652, 64
  %v1742 = vpop.permute.xlu0 %1741
  %1743 = vrot.lane.b32.xlu0 %v1653, 64
  %v1744 = vpop.permute.xlu0 %1743
  %1745 = vrot.lane.b32.xlu0 %v1654, 64
  %v1746 = vpop.permute.xlu0 %1745
  %1747 = vrot.lane.b32.xlu0 %v1655, 64
  %v1748 = vpop.permute.xlu0 %1747
  %1749 = vrot.lane.b32.xlu0 %v1656, 64
  %v1750 = vpop.permute.xlu0 %1749
  %1751 = vrot.lane.b32.xlu0 %v1657, 64
  %v1752 = vpop.permute.xlu0 %1751
  %1753 = vrot.lane.b32.xlu0 %v1658, 64
  %v1754 = vpop.permute.xlu0 %1753
  %1787 = vst.msk [vmem:[%s4] sm:$0xff] %vm209, %v1692
  %1788 = vst.msk [vmem:[%s4 + $0x8] sm:$0xff] %vm209, %v1694
  %1789 = vst.msk [vmem:[%s4 + $0x10] sm:$0xff] %vm209, %v1696
  %1790 = vst.msk [vmem:[%s4 + $0x18] sm:$0xff] %vm209, %v1698
  %1791 = vst.msk [vmem:[%s4 + $0x20] sm:$0xff] %vm209, %v1700
  %1792 = vst.msk [vmem:[%s4 + $0x28] sm:$0xff] %vm209, %v1702
  %1793 = vst.msk [vmem:[%s4 + $0x30] sm:$0xff] %vm209, %v1704
  %1794 = vst.msk [vmem:[%s4 + $0x38] sm:$0xff] %vm209, %v1706
  %1795 = vst.msk [vmem:[%s4 + $0x40] sm:$0xff] %vm209, %v1708
  %1796 = vst.msk [vmem:[%s4 + $0x48] sm:$0xff] %vm209, %v1710
  %1797 = vst.msk [vmem:[%s4 + $0x50] sm:$0xff] %vm209, %v1712
  %1798 = vst.msk [vmem:[%s4 + $0x58] sm:$0xff] %vm209, %v1714
  %1799 = vst.msk [vmem:[%s4 + $0x60] sm:$0xff] %vm209, %v1716
  %1800 = vst.msk [vmem:[%s4 + $0x68] sm:$0xff] %vm209, %v1718
  %1801 = vst.msk [vmem:[%s4 + $0x70] sm:$0xff] %vm209, %v1720
  %1802 = vst.msk [vmem:[%s4 + $0x78] sm:$0xff] %vm209, %v1722
  %1803 = vst.msk [vmem:[%s4 + $0x80] sm:$0xff] %vm209, %v1724
  %1804 = vst.msk [vmem:[%s4 + $0x88] sm:$0xff] %vm209, %v1726
  %1805 = vst.msk [vmem:[%s4 + $0x90] sm:$0xff] %vm209, %v1728
  %1806 = vst.msk [vmem:[%s4 + $0x98] sm:$0xff] %vm209, %v1730
  %1807 = vst.msk [vmem:[%s4 + $0xa0] sm:$0xff] %vm209, %v1732
  %1808 = vst.msk [vmem:[%s4 + $0xa8] sm:$0xff] %vm209, %v1734
  %1809 = vst.msk [vmem:[%s4 + $0xb0] sm:$0xff] %vm209, %v1736
  %1810 = vst.msk [vmem:[%s4 + $0xb8] sm:$0xff] %vm209, %v1738
  %1811 = vst.msk [vmem:[%s4 + $0xc0] sm:$0xff] %vm209, %v1740
  %1812 = vst.msk [vmem:[%s4 + $0xc8] sm:$0xff] %vm209, %v1742
  %1813 = vst.msk [vmem:[%s4 + $0xd0] sm:$0xff] %vm209, %v1744
  %1814 = vst.msk [vmem:[%s4 + $0xd8] sm:$0xff] %vm209, %v1746
  %1815 = vst.msk [vmem:[%s4 + $0xe0] sm:$0xff] %vm209, %v1748
  %1816 = vst.msk [vmem:[%s4 + $0xe8] sm:$0xff] %vm209, %v1750
  %1817 = vst.msk [vmem:[%s4 + $0xf0] sm:$0xff] %vm209, %v1752
  %1818 = vst.msk [vmem:[%s4 + $0xf8] sm:$0xff] %vm209, %v1754
  // Predicated region
  $region18: #{tpu_custom_call.1} parent=0 // pred_check
    _
  $region19: #{tpu_custom_call.1} parent=0 // pred_check_branch
    %1820 = sbr.rel (0) target = $region21
  $region20: #{tpu_custom_call.1} parent=0 // pred_region
    _
  $region21: #{tpu_custom_call.1} parent=0 // pred_fallthru
    _
  // Predicated region
  $region22: #{tpu_custom_call.1} parent=0 // pred_check
    _
  $region23: #{tpu_custom_call.1} parent=0 // pred_check_branch
    %1822 = sbr.rel (0) target = $region25
  $region24: #{tpu_custom_call.1} parent=0 // pred_region
    _
  $region25: #{tpu_custom_call.1} parent=0 // pred_fallthru
    _

</llo_original>
